<compile_context>
chip_gen: v6e
topology: v6e:2x2x1
jax: 0.10.0
libtpu: 0.0.40
codegen_flags: <defaults>
</compile_context>

<pallas_src>
import math

import jax
import jax.numpy as jnp
from jax.experimental import pallas as pl
from jax.experimental.pallas import tpu as pltpu


def _identity_kernel(x_ref, o_ref):
    # Elementwise identity — the entire forward pass of AddonEncoder.
    o_ref[...] = x_ref[...]


# ---------------------------------------------------------------------------
# Layout / tiling helpers
# ---------------------------------------------------------------------------

_VMEM_LIMIT_BYTES = 32 * 1024 * 1024       # explicit scoped-VMEM target; safe on
                                           # v5e (128 MiB), v6e (128 MiB), v7x (64 MiB)
_PIPELINE_BUFFERS = 4                      # 2 input + 2 output double buffers
_SPLIT_THRESHOLD_BYTES = 2 * 1024 * 1024   # only multi-step the grid past this


def _choose_2d_layout(total_elems: int):
    """Pick a lane-dense (rows, cols) factorization: cols % 128 == 0 and,
    when possible, rows a multiple of 8 (sublane alignment)."""
    for cols in (512, 256, 1024, 128, 2048):
        if total_elems % cols == 0 and (total_elems // cols) % 8 == 0:
            return total_elems // cols, cols
    for cols in (512, 256, 1024, 128, 2048):
        if total_elems % cols == 0:
            return total_elems // cols, cols
    return None


def _choose_tile_rows(rows: int, cols: int, itemsize: int) -> int:
    """Largest row tile that (a) divides rows exactly, (b) is sublane aligned,
    (c) keeps the 4 pipeline buffers inside the scoped-VMEM budget, and
    (d) leaves >= 2 grid steps for non-toy inputs so the copy actually
    double-buffers and shards across v7x's two TensorCores."""
    sub = max(8, 32 // itemsize)           # 8 (f32), 16 (bf16), 32 (int8/fp8)
    if rows <= sub:
        return rows                        # tiny input: single full block
    budget = (_VMEM_LIMIT_BYTES * 3) // 4  # headroom under vmem_limit_bytes
    max_tile_rows = max(sub, budget // (_PIPELINE_BUFFERS * cols * itemsize))

    divisors = [d for d in range(sub, rows + 1, sub) if rows % d == 0]
    if not divisors:
        return rows
    fitting = [d for d in divisors if d <= max_tile_rows] or [divisors[0]]

    total_bytes = rows * cols * itemsize
    if total_bytes >= _SPLIT_THRESHOLD_BYTES:
        multi_step = [d for d in fitting if rows // d >= 2]
        if multi_step:
            return max(multi_step)
    return max(fitting)


def addon_encoder_forward(x: jax.Array) -> jax.Array:
    """Pallas implementation of AddonEncoder.forward: returns x unchanged."""
    orig_shape = x.shape
    dtype = x.dtype
    itemsize = jnp.dtype(dtype).itemsize
    total = math.prod(orig_shape) if orig_shape else 1

    layout = _choose_2d_layout(total)
    if layout is None:
        # Fallback: full-array-dim escape hatch (lane dim not a 128 multiple).
        rows = math.prod(orig_shape[:-1]) if len(orig_shape) > 1 else 1
        cols = orig_shape[-1] if orig_shape else 1
        tile_rows = rows
    else:
        rows, cols = layout
        tile_rows = _choose_tile_rows(rows, cols, itemsize)

    x2d = x.reshape(rows, cols)
    grid = (rows // tile_rows,)

    # NOTE: pipeline_mode=pl.Buffered(3) on the input spec could recover a few
    # percent when the HBM read is the exposed edge; omitted to keep the VMEM
    # footprint at the budgeted 4 buffers.
    out2d = pl.pallas_call(
        _identity_kernel,
        out_shape=jax.ShapeDtypeStruct((rows, cols), dtype),
        grid_spec=pltpu.PrefetchScalarGridSpec(
            num_scalar_prefetch=0,
            grid=grid,
            in_specs=[pl.BlockSpec((tile_rows, cols), lambda i: (i, 0))],
            out_specs=pl.BlockSpec((tile_rows, cols), lambda i: (i, 0)),
        ),
        # Pure identity: alias input buffer 0 onto output 0 so no second HBM
        # tensor is allocated for the result.
        input_output_aliases={0: 0},
        compiler_params=pltpu.CompilerParams(
            dimension_semantics=("parallel",),
            vmem_limit_bytes=_VMEM_LIMIT_BYTES,
        ),
    )(x2d)

    return out2d.reshape(orig_shape)


if __name__ == "__main__":
    # AddonEncoder.__init__ defines no parameters, so nothing to initialize.
    key = jax.random.PRNGKey(0)
    x = jax.random.normal(key, (2, 4, 16, 16), dtype=jnp.float32)  # NCHW

    y = addon_encoder_forward(x)
    y = jax.block_until_ready(y)

    assert y.shape == x.shape and y.dtype == x.dtype
    assert bool(jnp.all(y == x))
    print("KERNEL_OK")
</pallas_src>

<mosaic_0001>
module attributes {stable_mosaic.version = 11 : i64} {
  func.func @_identity_kernel(%arg0: i32, %arg1: memref<8x256xf32, #tpu.memory_space<vmem>>, %arg2: memref<8x256xf32, #tpu.memory_space<vmem>>) attributes {dimension_semantics = [#tpu.dimension_semantics<parallel>], iteration_bounds = array<i64: 1>, scalar_prefetch = 0 : i64, scratch_operands = 0 : i64, tpu.core_type = #tpu.core_type<tc>, window_params = [{transform_indices = @transform_0, window_bounds = array<i64: 8, 256>}, {transform_indices = @transform_1, window_bounds = array<i64: 8, 256>}]} {
    %c0 = arith.constant 0 : index
    %c0_0 = arith.constant 0 : index
    %0 = vector.load %arg1[%c0, %c0_0] : memref<8x256xf32, #tpu.memory_space<vmem>>, vector<8x256xf32>
    %c0_1 = arith.constant 0 : index
    %c0_2 = arith.constant 0 : index
    %1 = vector.load %arg2[%c0_1, %c0_2] : memref<8x256xf32, #tpu.memory_space<vmem>>, vector<8x256xf32>
    tpu.vector_store %arg2[%c0_1, %c0_2], %0 {strides = array<i32>} : memref<8x256xf32, #tpu.memory_space<vmem>>, vector<8x256xf32>,
    return
  }
  func.func @transform_0(%arg0: i32) -> (i32, i32) {
    %c0_i32 = arith.constant 0 : i32
    %c0_i32_0 = arith.constant 0 : i32
    return %arg0, %c0_i32 : i32, i32
  }
  func.func @transform_1(%arg0: i32) -> (i32, i32) {
    %c0_i32 = arith.constant 0 : i32
    %c0_i32_0 = arith.constant 0 : i32
    return %arg0, %c0_i32 : i32, i32
  }
}

</mosaic_0001>

<llo_original>
// kernel: tpu_custom_call.1
$region0: #{tpu_custom_call.1}
  #allocation0 [shape = 'u32[]', space=smem, size = 0x4, offset = 0x4, fixed_abs, tag = 'smem constant byte address 0x4 - core index']
  #allocation1 [shape = 'u32[144,128]{1,0:T(1,128)}', space=vmem, size = 0x12000, scoped, tag = 'internal scratch']
  %s0 = inlined_call_operand.hbm [shape: f32[8,256], index: 0, kind: input, shape index: {}, may-alias: {0,1}]
  %s1 = inlined_call_operand.hbm [shape: f32[8,256], index: 1, kind: output, shape index: {}, may-alias: {0,1}]
  %s2 = sld [smem:[#allocation0]]
  $region18: #{tpu_custom_call.1} parent=0
    _
  %s4 = ssub.s32 1, %s2
  %s5 = scalar_select 0, %s4, %s2
  $region1: #{tpu_custom_call.1} parent=0
    #allocation2 [shape = 'u8[8192]{0}', space=vmem, size = 0x2000, scoped, tag = 'input window, operand 0, single buffered']
    #allocation3 [shape = 's32[1]{0}', space=sflag, size = 0x4, scoped, tag = 'scoped memory for tpu_custom_call.1']
    #allocation4 [shape = 's32[1]{0}', space=sflag, size = 0x4, scoped, tag = 'scoped memory for tpu_custom_call.1']
    #allocation5 [shape = 'u8[8192]{0}', space=vmem, size = 0x2000, scoped, tag = 'output window, operand 0, single buffered']
    %6 = vsyncpa [#allocation3], 0
    %7 = vsyncpa [#allocation4], 0
    // Predicated region
    $region2: #{tpu_custom_call.1} parent=1 // pred_check
      _
    $region3: #{tpu_custom_call.1} parent=1 // pred_check_branch
      %9 = sbr.rel (0) target = $region5
    $region4: #{tpu_custom_call.1} parent=1 // pred_region
      %s11 = ssub.s32 256, 256
      %12 = vsyncadd [#allocation3], %s11
      %s14 = sshll.u32 [#allocation2], 4
      %s15 = int_to_ptr.vmem [resolvable:$true] %s14
      %17 = dma.hbm_to_vmem [thread:$0]  %s0, 256, %s15, [#allocation3]
    $region5: #{tpu_custom_call.1} parent=1 // pred_fallthru
      _
    // Predicated region
    $region6: #{tpu_custom_call.1} parent=1 // pred_check
      _
    $region7: #{tpu_custom_call.1} parent=1 // pred_check_branch
      %19 = sbr.rel (0) target = $region9
    $region8: #{tpu_custom_call.1} parent=1 // pred_region
      %20 = dma.done [#allocation3], 256
    $region9: #{tpu_custom_call.1} parent=1 // pred_fallthru
      _
    %v21 = vld [vmem:[#allocation2] sm:$0xff]
    %v22 = vld [vmem:[#allocation2 + $0x8] sm:$0xff]
    %23 = vst [vmem:[#allocation5] sm:$0xff] %v21
    %24 = vst [vmem:[#allocation5 + $0x8] sm:$0xff] %v22
    // Predicated region
    $region10: #{tpu_custom_call.1} parent=1 // pred_check
      _
    $region11: #{tpu_custom_call.1} parent=1 // pred_check_branch
      %26 = sbr.rel (0) target = $region13
    $region12: #{tpu_custom_call.1} parent=1 // pred_region
      %s28 = ssub.s32 256, 256
      %29 = vsyncadd [#allocation4], %s28
      %s31 = sshll.u32 [#allocation5], 4
      %s32 = int_to_ptr.vmem [resolvable:$true] %s31
      %34 = dma.vmem_to_hbm [thread:$0]  %s32, 256, %s1, [#allocation4]
    $region13: #{tpu_custom_call.1} parent=1 // pred_fallthru
      _
    // Predicated region
    $region14: #{tpu_custom_call.1} parent=1 // pred_check
      _
    $region15: #{tpu_custom_call.1} parent=1 // pred_check_branch
      %36 = sbr.rel (0) target = $region17
    $region16: #{tpu_custom_call.1} parent=1 // pred_region
      %37 = dma.done [#allocation4], 256
    $region17: #{tpu_custom_call.1} parent=1 // pred_fallthru
      _
    %38 = vsyncpa [#allocation3], 1
    %39 = vsyncpa [#allocation4], 1

</llo_original>
